<compile_context>
chip_gen: v6e
topology: v6e:2x2x1
jax: 0.10.0
libtpu: 0.0.40
codegen_flags: <defaults>
</compile_context>

<pallas_src>
import functools

import jax
import jax.numpy as jnp
from jax.experimental import pallas as pl
from jax.experimental.pallas import tpu as pltpu


MXU_DTYPE = jnp.bfloat16      # MXU operand dtype (accumulation stays f32)
ACT_DTYPE = jnp.bfloat16      # inter-kernel activation storage dtype
_VMEM_LIMIT = 48 * 1024 * 1024  # <= v7x physical 64 MiB; headroom on v5e/v6e


def _round_up(x, m):
    return -(-x // m) * m


def _tile_rows(dim, target):
    """Sublane-axis tile: multiple of 8 dividing dim, or the full dim."""
    if dim <= target:
        return dim
    t = target
    while t >= 8 and dim % t:
        t //= 2
    return t if (t >= 8 and dim % t == 0) else dim


def _tile_lanes(dim, target):
    """Lane-axis tile: multiple of 128 dividing dim, or the full dim."""
    if dim <= target:
        return dim
    t = target
    while t >= 128 and dim % t:
        t //= 2
    return t if (t >= 128 and dim % t == 0) else dim


# ---------------------------------------------------------------------------
# Pallas kernels
# ---------------------------------------------------------------------------

def _linear_kernel(*refs, activation, has_residual):
    if has_residual:
        x_ref, w_ref, b_ref, r_ref, o_ref, acc_ref = refs
    else:
        x_ref, w_ref, b_ref, o_ref, acc_ref = refs
        r_ref = None

    @pl.when(pl.program_id(2) == 0)
    def _init():
        acc_ref[...] = jnp.zeros_like(acc_ref)

    acc_ref[...] += jnp.dot(x_ref[...].astype(MXU_DTYPE),
                            w_ref[...].astype(MXU_DTYPE),
                            preferred_element_type=jnp.float32)

    @pl.when(pl.program_id(2) == pl.num_programs(2) - 1)
    def _finalize():
        y = acc_ref[...] + b_ref[...]
        if activation == "gelu":        # nn.GELU() default = exact erf GELU
            y = jax.nn.gelu(y, approximate=False)
        elif activation == "tanh":      # heads.Pooler activation
            y = jnp.tanh(y)
        if has_residual:
            y = y + r_ref[...].astype(jnp.float32)
        o_ref[...] = y.astype(o_ref.dtype)


def linear(x, w, b, activation=None, residual=None, out_dtype=jnp.float32,
           tm=512, tn=512, tk=768):
    """y = act(x @ w + b) [+ residual].  x:(M,K) w:(K,N) b:(N,) -> (M,N)."""
    M, K = x.shape
    N = w.shape[1]
    tm = _tile_rows(M, tm)
    tn = _tile_lanes(N, tn)
    tk = _tile_lanes(K, tk)

    in_specs = [pl.BlockSpec((tm, tk), lambda i, j, k: (i, k)),
                pl.BlockSpec((tk, tn), lambda i, j, k: (k, j)),
                pl.BlockSpec((1, tn), lambda i, j, k: (0, j))]
    args = [x, w, b.reshape(1, N)]
    if residual is not None:
        in_specs.append(pl.BlockSpec((tm, tn), lambda i, j, k: (i, j)))
        args.append(residual)

    return pl.pallas_call(
        functools.partial(_linear_kernel, activation=activation,
                          has_residual=residual is not None),
        out_shape=jax.ShapeDtypeStruct((M, N), out_dtype),
        grid=(M // tm, N // tn, K // tk),
        in_specs=in_specs,
        out_specs=pl.BlockSpec((tm, tn), lambda i, j, k: (i, j)),
        scratch_shapes=[pltpu.VMEM((tm, tn), jnp.float32)],
        compiler_params=pltpu.CompilerParams(
            dimension_semantics=("parallel", "parallel", "arbitrary"),
            vmem_limit_bytes=_VMEM_LIMIT),
    )(*args)


def _ln_linear_kernel(x_ref, g_ref, bln_ref, w_ref, b_ref, o_ref, xn_ref, *,
                      eps, activation):
    # Normalize the row block once per M-tile (j == 0), cache it (bf16) in a
    # VMEM scratch, and reuse it for every N tile.  The j axis is marked
    # "arbitrary" so megacore never splits it and the scratch stays valid.
    @pl.when(pl.program_id(1) == 0)
    def _ln():
        x = x_ref[...].astype(jnp.float32)
        mu = jnp.mean(x, axis=-1, keepdims=True)
        xc = x - mu
        var = jnp.mean(xc * xc, axis=-1, keepdims=True)
        xn = xc * jax.lax.rsqrt(var + eps) * g_ref[...] + bln_ref[...]
        xn_ref[...] = xn.astype(xn_ref.dtype)

    y = jnp.dot(xn_ref[...], w_ref[...].astype(MXU_DTYPE),
                preferred_element_type=jnp.float32) + b_ref[...]
    if activation == "gelu":
        y = jax.nn.gelu(y, approximate=False)
    elif activation == "tanh":
        y = jnp.tanh(y)
    o_ref[...] = y.astype(o_ref.dtype)


def ln_linear(x, ln_g, ln_b, w, b, eps, activation=None,
              out_dtype=jnp.float32, tm=512, tn=512):
    """y = act(LayerNorm(x) @ w + b) with LN fused into the GEMM (full K)."""
    M, K = x.shape
    N = w.shape[1]
    tm = _tile_rows(M, tm)
    tn = _tile_lanes(N, tn)
    return pl.pallas_call(
        functools.partial(_ln_linear_kernel, eps=eps, activation=activation),
        out_shape=jax.ShapeDtypeStruct((M, N), out_dtype),
        grid=(M // tm, N // tn),
        in_specs=[pl.BlockSpec((tm, K), lambda i, j: (i, 0)),
                  pl.BlockSpec((1, K), lambda i, j: (0, 0)),
                  pl.BlockSpec((1, K), lambda i, j: (0, 0)),
                  pl.BlockSpec((K, tn), lambda i, j: (0, j)),
                  pl.BlockSpec((1, tn), lambda i, j: (0, j))],
        out_specs=pl.BlockSpec((tm, tn), lambda i, j: (i, j)),
        scratch_shapes=[pltpu.VMEM((tm, K), MXU_DTYPE)],
        compiler_params=pltpu.CompilerParams(
            dimension_semantics=("parallel", "arbitrary"),
            vmem_limit_bytes=_VMEM_LIMIT),
    )(x, ln_g.reshape(1, K), ln_b.reshape(1, K), w, b.reshape(1, N))


def _layernorm_kernel(x_ref, g_ref, b_ref, o_ref, *, eps):
    x = x_ref[...].astype(jnp.float32)
    mu = jnp.mean(x, axis=-1, keepdims=True)
    xc = x - mu
    var = jnp.mean(xc * xc, axis=-1, keepdims=True)
    o_ref[...] = (xc * jax.lax.rsqrt(var + eps) * g_ref[...]
                  + b_ref[...]).astype(o_ref.dtype)


def layernorm(x, g, b, eps, out_dtype=jnp.float32, tm=512):
    M, H = x.shape
    tm = _tile_rows(M, tm)
    return pl.pallas_call(
        functools.partial(_layernorm_kernel, eps=eps),
        out_shape=jax.ShapeDtypeStruct((M, H), out_dtype),
        grid=(M // tm,),
        in_specs=[pl.BlockSpec((tm, H), lambda i: (i, 0)),
                  pl.BlockSpec((1, H), lambda i: (0, 0)),
                  pl.BlockSpec((1, H), lambda i: (0, 0))],
        out_specs=pl.BlockSpec((tm, H), lambda i: (i, 0)),
        compiler_params=pltpu.CompilerParams(
            dimension_semantics=("parallel",),
            vmem_limit_bytes=_VMEM_LIMIT),
    )(x, g.reshape(1, H), b.reshape(1, H))


def _attention_group_kernel(q_ref, k_ref, v_ref, m_ref, o_ref, *,
                            heads_per_group, head_dim):
    """One batch element x one 128-lane head group per grid step."""
    m = m_ref[0]                                   # (1, L) additive bias, f32
    q = q_ref[0]                                   # (L, 128) aligned block
    k = k_ref[0]
    v = v_ref[0]
    outs = []
    for h in range(heads_per_group):               # tiny static unroll (<= 16)
        lo = h * head_dim
        qh = q[:, lo:lo + head_dim].astype(MXU_DTYPE)
        kh = k[:, lo:lo + head_dim].astype(MXU_DTYPE)
        vh = v[:, lo:lo + head_dim].astype(MXU_DTYPE)
        # 1/sqrt(Dh) is pre-folded into the q columns of qkv_w / qkv_b.
        s = jax.lax.dot_general(qh, kh, (((1,), (1,)), ((), ())),
                                preferred_element_type=jnp.float32) + m
        s = s - jnp.max(s, axis=-1, keepdims=True)
        p = jnp.exp(s)
        p = p * pl.reciprocal(jnp.sum(p, axis=-1, keepdims=True), approx=False)
        outs.append(jnp.dot(p.astype(MXU_DTYPE), vh,
                            preferred_element_type=jnp.float32))
    # Single lane-dense (L, 128) store for the whole head group.
    o_ref[...] = jnp.concatenate(outs, axis=-1)[None].astype(o_ref.dtype)


def _attention_full_kernel(qkv_ref, m_ref, o_ref, *, num_heads, head_dim):
    """Fallback for small / oddly shaped models: all heads in one step."""
    H = num_heads * head_dim
    m = m_ref[0]
    qkv = qkv_ref[0]                                # (L, 3H)
    outs = []
    for h in range(num_heads):
        lo = h * head_dim
        qh = qkv[:, lo:lo + head_dim].astype(MXU_DTYPE)
        kh = qkv[:, H + lo:H + lo + head_dim].astype(MXU_DTYPE)
        vh = qkv[:, 2 * H + lo:2 * H + lo + head_dim].astype(MXU_DTYPE)
        s = jax.lax.dot_general(qh, kh, (((1,), (1,)), ((), ())),
                                preferred_element_type=jnp.float32) + m
        s = s - jnp.max(s, axis=-1, keepdims=True)
        p = jnp.exp(s)
        p = p * pl.reciprocal(jnp.sum(p, axis=-1, keepdims=True), approx=False)
        outs.append(jnp.dot(p.astype(MXU_DTYPE), vh,
                            preferred_element_type=jnp.float32))
    o_ref[...] = jnp.concatenate(outs, axis=-1)[None].astype(o_ref.dtype)


def attention(qkv, mask_bias, num_heads, head_dim, out_dtype=jnp.float32):
    """qkv: (B, L, 3H) in timm layout [q heads | k heads | v heads],
    mask_bias: (B, 1, L) additive bias -> (B, L, H).  The 1/sqrt(Dh) scale is
    assumed pre-folded into the q weights (see prepare_params)."""
    B, L, _ = qkv.shape
    H = num_heads * head_dim
    grouped = (H % 128 == 0) and (head_dim <= 128) and (128 % head_dim == 0)
    if grouped:
        # Lane-aligned 128-wide q/k/v windows + a second parallel grid axis:
        # better megacore balance on v7x and small vreg footprint everywhere.
        W = 128
        hpg = W // head_dim
        G = H // W
        return pl.pallas_call(
            functools.partial(_attention_group_kernel,
                              heads_per_group=hpg, head_dim=head_dim),
            out_shape=jax.ShapeDtypeStruct((B, L, H), out_dtype),
            grid=(B, G),
            in_specs=[pl.BlockSpec((1, L, W), lambda b, g: (b, 0, g)),
                      pl.BlockSpec((1, L, W), lambda b, g: (b, 0, G + g)),
                      pl.BlockSpec((1, L, W), lambda b, g: (b, 0, 2 * G + g)),
                      pl.BlockSpec((1, 1, L), lambda b, g: (b, 0, 0))],
            out_specs=pl.BlockSpec((1, L, W), lambda b, g: (b, 0, g)),
            compiler_params=pltpu.CompilerParams(
                dimension_semantics=("parallel", "parallel"),
                vmem_limit_bytes=_VMEM_LIMIT),
        )(qkv, qkv, qkv, mask_bias)
    return pl.pallas_call(
        functools.partial(_attention_full_kernel,
                          num_heads=num_heads, head_dim=head_dim),
        out_shape=jax.ShapeDtypeStruct((B, L, H), out_dtype),
        grid=(B,),
        in_specs=[pl.BlockSpec((1, L, 3 * H), lambda b: (b, 0, 0)),
                  pl.BlockSpec((1, 1, L), lambda b: (b, 0, 0))],
        out_specs=pl.BlockSpec((1, L, H), lambda b: (b, 0, 0)),
        compiler_params=pltpu.CompilerParams(
            dimension_semantics=("parallel",),
            vmem_limit_bytes=_VMEM_LIMIT),
    )(qkv, mask_bias)


# ---------------------------------------------------------------------------
# Parameter initialization (deterministic, synthetic) + one-time prep
# ---------------------------------------------------------------------------

def init_params(key, cfg):
    H = cfg["hidden_size"]
    V = cfg["vocab_size"]
    T = cfg["max_text_len"]
    P = cfg["patch_size"]
    C = 3
    nP = (cfg["image_size"] // P) ** 2
    I = H * cfg["mlp_ratio"]
    keys = iter(jax.random.split(key, 128))
    nrm = lambda shape: 0.02 * jax.random.normal(next(keys), shape, jnp.float32)

    params = dict(
        # BertEmbeddings
        word_emb=nrm((V, H)),
        bert_pos_emb=nrm((T, H)),
        bert_tok_type_emb=nrm((2, H)),
        bert_ln_g=jnp.ones((H,), jnp.float32),
        bert_ln_b=jnp.zeros((H,), jnp.float32),
        # model-level token_type_embeddings (text=0, image=1)
        token_type_emb=nrm((2, H)),
        # ViT patch embedding: conv weight (H, C, P, P) flattened to (C*P*P, H)
        patch_w=nrm((C * P * P, H)),
        patch_b=jnp.zeros((H,), jnp.float32),
        cls_token=nrm((1, 1, H)),
        vit_pos_emb=nrm((1, 1 + nP, H)),
        vit_norm_g=jnp.ones((H,), jnp.float32),
        vit_norm_b=jnp.zeros((H,), jnp.float32),
        # Pooler
        pooler_w=nrm((H, H)),
        pooler_b=jnp.zeros((H,), jnp.float32),
        blocks=[],
    )
    for _ in range(cfg["num_layers"]):
        params["blocks"].append(dict(
            ln1_g=jnp.ones((H,), jnp.float32), ln1_b=jnp.zeros((H,), jnp.float32),
            qkv_w=nrm((H, 3 * H)), qkv_b=jnp.zeros((3 * H,), jnp.float32),
            proj_w=nrm((H, H)), proj_b=jnp.zeros((H,), jnp.float32),
            ln2_g=jnp.ones((H,), jnp.float32), ln2_b=jnp.zeros((H,), jnp.float32),
            fc1_w=nrm((H, I)), fc1_b=jnp.zeros((I,), jnp.float32),
            fc2_w=nrm((I, H)), fc2_b=jnp.zeros((H,), jnp.float32),
        ))
    return params


def prepare_params(params, cfg):
    """One-time prep (zero per-forward cost): fold 1/sqrt(Dh) into the q
    columns of qkv_w/qkv_b and cast GEMM weights to the MXU dtype (bf16),
    halving weight HBM traffic."""
    H = cfg["hidden_size"]
    Dh = H // cfg["num_heads"]
    scale = Dh ** -0.5
    p = dict(params)
    p["patch_w"] = params["patch_w"].astype(MXU_DTYPE)
    p["pooler_w"] = params["pooler_w"].astype(MXU_DTYPE)
    blocks = []
    for blk in params["blocks"]:
        b = dict(blk)
        b["qkv_w"] = blk["qkv_w"].at[:, :H].multiply(scale).astype(MXU_DTYPE)
        b["qkv_b"] = blk["qkv_b"].at[:H].multiply(scale)
        b["proj_w"] = blk["proj_w"].astype(MXU_DTYPE)
        b["fc1_w"] = blk["fc1_w"].astype(MXU_DTYPE)
        b["fc2_w"] = blk["fc2_w"].astype(MXU_DTYPE)
        blocks.append(b)
    p["blocks"] = blocks
    return p


# ---------------------------------------------------------------------------
# ViLT_Retrieval.forward
# ---------------------------------------------------------------------------

def vilt_forward(params, image, input_ids, text_mask, cfg):
    B = image.shape[0]
    H = cfg["hidden_size"]
    nH = cfg["num_heads"]
    Dh = H // nH
    P = cfg["patch_size"]
    C = image.shape[1]
    gh = image.shape[2] // P
    gw = image.shape[3] // P
    nP = gh * gw
    T = input_ids.shape[1]

    # ------------------ vision_embed ------------------
    # Non-overlapping patch conv == im2col reshape + Pallas matmul.
    # TODO(synk): ViLT's visual_embed additionally does pos-embed interpolation
    # and max_image_len-limited patch sampling; full grid (all-ones mask) used here.
    patches = image.reshape(B, C, gh, P, gw, P)
    patches = patches.transpose(0, 2, 4, 1, 3, 5).reshape(B * nP, C * P * P)
    patch_tok = linear(patches, params["patch_w"], params["patch_b"]).reshape(B, nP, H)
    cls = jnp.broadcast_to(params["cls_token"], (B, 1, H))
    img = jnp.concatenate([cls, patch_tok], axis=1) + params["vit_pos_emb"]
    image_mask = jnp.ones((B, 1 + nP), jnp.float32)
    image_embed = img + params["token_type_emb"][1][None, None, :]

    # ------------------ text_embed ------------------
    we = params["word_emb"][input_ids]                    # (B, T, H)
    pe = params["bert_pos_emb"][:T][None]                 # (1, T, H)
    tte = params["bert_tok_type_emb"][0][None, None, :]   # BERT-internal type-0
    te = we + pe + tte
    # model-level token_type_embeddings[0] (added after the BERT LN) folds
    # exactly into the LayerNorm bias.
    bert_ln_bias = params["bert_ln_b"] + params["token_type_emb"][0]
    text_embed = layernorm(te.reshape(B * T, H), params["bert_ln_g"],
                           bert_ln_bias, 1e-12).reshape(B, T, H)

    # ------------------ cross_encoder ------------------
    x = jnp.concatenate([text_embed, image_embed], axis=1)            # (B, Lr, H)
    mask = jnp.concatenate([text_mask.astype(jnp.float32), image_mask], axis=1)
    L_raw = x.shape[1]
    # Pad the sequence once (multiple of 8) so every block is vreg-aligned
    # across all layers.  Padded *key* columns are killed by mask_bias; padded
    # *query* rows carry through the stack (~4% wasted GEMM rows) and are
    # sliced off at the end — intentional, do not "fix" by re-slicing per layer.
    L = _round_up(L_raw, 8)
    if L != L_raw:
        x = jnp.pad(x, ((0, 0), (0, L - L_raw), (0, 0)))
        mask = jnp.pad(mask, ((0, 0), (0, L - L_raw)))
    mask_bias = ((1.0 - mask) * (-1e9)).reshape(B, 1, L)

    M = B * L
    x2d = x.reshape(M, H).astype(ACT_DTYPE)           # bf16 residual stream
    for blk in params["blocks"]:
        # --- attention (pre-LN, timm ViT block): LN1 fused into QKV GEMM ---
        qkv = ln_linear(x2d, blk["ln1_g"], blk["ln1_b"],
                        blk["qkv_w"], blk["qkv_b"], 1e-6,
                        out_dtype=ACT_DTYPE)                          # (M, 3H)
        attn = attention(qkv.reshape(B, L, 3 * H), mask_bias, nH, Dh,
                         out_dtype=ACT_DTYPE)                         # (B, L, H)
        # proj GEMM with residual add fused into the output write.
        x2d = linear(attn.reshape(M, H), blk["proj_w"], blk["proj_b"],
                     residual=x2d, out_dtype=ACT_DTYPE)
        # --- MLP: LN2+fc1+GELU fused; fc2 with residual fused ---
        h1 = ln_linear(x2d, blk["ln2_g"], blk["ln2_b"],
                       blk["fc1_w"], blk["fc1_b"], 1e-6, activation="gelu",
                       out_dtype=ACT_DTYPE)
        x2d = linear(h1, blk["fc2_w"], blk["fc2_b"], residual=x2d,
                     out_dtype=ACT_DTYPE)

    xn = layernorm(x2d, params["vit_norm_g"], params["vit_norm_b"], 1e-6)
    xn = xn.reshape(B, L, H)[:, :L_raw]

    text_feats = xn[:, :T]
    image_feats = xn[:, T:]
    # Pooler: Linear on CLS token + tanh.
    cls_feats = linear(xn[:, 0, :], params["pooler_w"], params["pooler_b"],
                       activation="tanh")
    return text_feats, image_feats, cls_feats


# ---------------------------------------------------------------------------

if __name__ == "__main__":
    cfg = dict(vocab_size=64, hidden_size=32, num_layers=2, num_heads=4,
               mlp_ratio=4, max_text_len=8, image_size=16, patch_size=8,
               max_image_len=-1, drop_rate=0.0)

    key = jax.random.PRNGKey(0)
    pkey, ikey, tkey = jax.random.split(key, 3)
    params = prepare_params(init_params(pkey, cfg), cfg)

    B = 2
    image = jax.random.normal(
        ikey, (B, 3, cfg["image_size"], cfg["image_size"]), jnp.float32)
    input_ids = jax.random.randint(
        tkey, (B, cfg["max_text_len"]), 0, cfg["vocab_size"], dtype=jnp.int32)
    text_mask = jnp.ones((B, cfg["max_text_len"]), jnp.int32)

    text_feats, image_feats, cls_feats = vilt_forward(
        params, image, input_ids, text_mask, cfg)
    jax.block_until_ready((text_feats, image_feats, cls_feats))

    assert text_feats.shape == (B, cfg["max_text_len"], cfg["hidden_size"])
    assert image_feats.shape == (B, 1 + (cfg["image_size"] // cfg["patch_size"]) ** 2,
                                 cfg["hidden_size"])
    assert cls_feats.shape == (B, cfg["hidden_size"])
    assert jnp.all(jnp.isfinite(text_feats))
    assert jnp.all(jnp.isfinite(image_feats))
    assert jnp.all(jnp.isfinite(cls_feats))
    print("KERNEL_OK")
</pallas_src>

<mosaic_0001>
module attributes {stable_mosaic.version = 11 : i64} {
  func.func @_linear_kernel(%arg0: i32, %arg1: i32, %arg2: i32, %arg3: memref<8x192xf32, #tpu.memory_space<vmem>>, %arg4: memref<192x32xbf16, #tpu.memory_space<vmem>>, %arg5: memref<1x32xf32, #tpu.memory_space<vmem>>, %arg6: memref<8x32xf32, #tpu.memory_space<vmem>>, %arg7: memref<8x32xf32, #tpu.memory_space<vmem>>) attributes {dimension_semantics = [#tpu.dimension_semantics<parallel>, #tpu.dimension_semantics<parallel>, #tpu.dimension_semantics<arbitrary>], iteration_bounds = array<i64: 1, 1, 1>, scalar_prefetch = 0 : i64, scratch_operands = 1 : i64, tpu.core_type = #tpu.core_type<tc>, window_params = [{transform_indices = @transform_0, window_bounds = array<i64: 8, 192>}, {transform_indices = @transform_1, window_bounds = array<i64: 192, 32>}, {transform_indices = @transform_2, window_bounds = array<i64: 1, 32>}, {transform_indices = @transform_3, window_bounds = array<i64: 8, 32>}]} {
    %c0_i32 = arith.constant 0 : i32
    %0 = arith.cmpi eq, %arg2, %c0_i32 : i32
    %1 = arith.extui %0 : i1 to i32
    %c0_i32_0 = arith.constant 0 : i32
    %2 = arith.cmpi ne, %1, %c0_i32_0 : i32
    scf.if %2 {
      %cst_10 = arith.constant 0.000000e+00 : f32
      %13 = vector.broadcast %cst_10 : f32 to vector<8x32xf32>
      %c0_11 = arith.constant 0 : index
      %c0_12 = arith.constant 0 : index
      %14 = vector.load %arg7[%c0_11, %c0_12] : memref<8x32xf32, #tpu.memory_space<vmem>>, vector<8x32xf32>
      tpu.vector_store %arg7[%c0_11, %c0_12], %13 {strides = array<i32>} : memref<8x32xf32, #tpu.memory_space<vmem>>, vector<8x32xf32>,
    } else {
    }
    %c0 = arith.constant 0 : index
    %c0_1 = arith.constant 0 : index
    %3 = vector.load %arg7[%c0, %c0_1] : memref<8x32xf32, #tpu.memory_space<vmem>>, vector<8x32xf32>
    %c0_2 = arith.constant 0 : index
    %c0_3 = arith.constant 0 : index
    %4 = vector.load %arg3[%c0_2, %c0_3] : memref<8x192xf32, #tpu.memory_space<vmem>>, vector<8x192xf32>
    %5 = arith.truncf %4 : vector<8x192xf32> to vector<8x192xbf16>
    %c0_4 = arith.constant 0 : index
    %c0_5 = arith.constant 0 : index
    %6 = vector.load %arg4[%c0_4, %c0_5] : memref<192x32xbf16, #tpu.memory_space<vmem>>, vector<192x32xbf16>
    %cst = arith.constant dense<0.000000e+00> : vector<8x32xf32>
    %7 = tpu.matmul %5, %6, %cst {dimension_numbers = #tpu.dot_dimension_numbers<[1], [0], [0], [1], [0, 0, 1, 1], [], []>} : vector<8x192xbf16>, vector<192x32xbf16>, vector<8x32xf32> -> vector<8x32xf32>
    %8 = arith.addf %3, %7 : vector<8x32xf32>
    %c0_6 = arith.constant 0 : index
    %c0_7 = arith.constant 0 : index
    %9 = vector.load %arg7[%c0_6, %c0_7] : memref<8x32xf32, #tpu.memory_space<vmem>>, vector<8x32xf32>
    tpu.vector_store %arg7[%c0_6, %c0_7], %8 {strides = array<i32>} : memref<8x32xf32, #tpu.memory_space<vmem>>, vector<8x32xf32>,
    %c0_i32_8 = arith.constant 0 : i32
    %10 = arith.cmpi eq, %arg2, %c0_i32_8 : i32
    %11 = arith.extui %10 : i1 to i32
    %c0_i32_9 = arith.constant 0 : i32
    %12 = arith.cmpi ne, %11, %c0_i32_9 : i32
    scf.if %12 {
      %c0_10 = arith.constant 0 : index
      %c0_11 = arith.constant 0 : index
      %13 = vector.load %arg7[%c0_10, %c0_11] : memref<8x32xf32, #tpu.memory_space<vmem>>, vector<8x32xf32>
      %c0_12 = arith.constant 0 : index
      %c0_13 = arith.constant 0 : index
      %14 = vector.load %arg5[%c0_12, %c0_13] : memref<1x32xf32, #tpu.memory_space<vmem>>, vector<1x32xf32>
      %15 = vector.broadcast %14 : vector<1x32xf32> to vector<8x32xf32>
      %16 = arith.addf %13, %15 : vector<8x32xf32>
      %c0_14 = arith.constant 0 : index
      %c0_15 = arith.constant 0 : index
      %17 = vector.load %arg6[%c0_14, %c0_15] : memref<8x32xf32, #tpu.memory_space<vmem>>, vector<8x32xf32>
      tpu.vector_store %arg6[%c0_14, %c0_15], %16 {strides = array<i32>} : memref<8x32xf32, #tpu.memory_space<vmem>>, vector<8x32xf32>,
    } else {
    }
    return
  }
  func.func @transform_0(%arg0: i32, %arg1: i32, %arg2: i32) -> (i32, i32) {
    %c0_i32 = arith.constant 0 : i32
    return %arg0, %arg2 : i32, i32
  }
  func.func @transform_1(%arg0: i32, %arg1: i32, %arg2: i32) -> (i32, i32) {
    %c0_i32 = arith.constant 0 : i32
    return %arg2, %arg1 : i32, i32
  }
  func.func @transform_2(%arg0: i32, %arg1: i32, %arg2: i32) -> (i32, i32) {
    %c0_i32 = arith.constant 0 : i32
    %c0_i32_0 = arith.constant 0 : i32
    return %c0_i32, %arg1 : i32, i32
  }
  func.func @transform_3(%arg0: i32, %arg1: i32, %arg2: i32) -> (i32, i32) {
    %c0_i32 = arith.constant 0 : i32
    return %arg0, %arg1 : i32, i32
  }
}

</mosaic_0001>

<llo_original>
// kernel: tpu_custom_call.1
$region0: #{tpu_custom_call.1}
  #allocation0 [shape = 'u32[]', space=smem, size = 0x4, offset = 0x4, fixed_abs, tag = 'smem constant byte address 0x4 - core index']
  #allocation1 [shape = 'u32[144,128]{1,0:T(1,128)}', space=vmem, size = 0x12000, scoped, tag = 'internal scratch']
  #allocation2 [shape = 'f32[8,32]{1,0:T(8,128)}', space=vmem, size = 0x1000, scoped, tag = 'scratch operand']
  %s0 = inlined_call_operand.vmem [shape: f32[8,192], index: 0, kind: input, shape index: {}]
  %s1 = inlined_call_operand.vmem [shape: bf16[192,32], index: 1, kind: input, shape index: {}]
  %s2 = inlined_call_operand.vmem [shape: f32[1,32], index: 2, kind: input, shape index: {}]
  %s3 = inlined_call_operand.hbm [shape: f32[8,32], index: 3, kind: output, shape index: {}]
  %s4 = sld [smem:[#allocation0]]
  $region30: #{tpu_custom_call.1} parent=0
    _
  %s6 = ssub.s32 1, %s4
  %s7 = scalar_select 0, %s6, %s4
  $region1: #{tpu_custom_call.1} parent=0
    #allocation3 [shape = 'u8[4096]{0}', space=vmem, size = 0x1000, scoped, tag = 'output window, operand 0, single buffered']
    #allocation4 [shape = 's32[1]{0}', space=sflag, size = 0x4, scoped, tag = 'scoped memory for tpu_custom_call.1']
    %8 = vsyncpa [#allocation4], 0
    // Predicated region
    $region2: #{tpu_custom_call.1} parent=1 // pred_check
      _
    $region3: #{tpu_custom_call.1} parent=1 // pred_check_branch
      %10 = sbr.rel (0) target = $region5
    $region4: #{tpu_custom_call.1} parent=1 // pred_region
      _
    $region5: #{tpu_custom_call.1} parent=1 // pred_fallthru
      _
    // Predicated region
    $region6: #{tpu_custom_call.1} parent=1 // pred_check
      _
    $region7: #{tpu_custom_call.1} parent=1 // pred_check_branch
      %12 = sbr.rel (0) target = $region9
    $region8: #{tpu_custom_call.1} parent=1 // pred_region
      _
    $region9: #{tpu_custom_call.1} parent=1 // pred_fallthru
      _
    // Predicated region
    $region10: #{tpu_custom_call.1} parent=1 // pred_check
      _
    $region11: #{tpu_custom_call.1} parent=1 // pred_check_branch
      %14 = sbr.rel (0) target = $region13
    $region12: #{tpu_custom_call.1} parent=1 // pred_region
      _
    $region13: #{tpu_custom_call.1} parent=1 // pred_fallthru
      _
    %p16 = scmp.eq.s32.totalorder 0, 0
    // Predicated region
    $region14: #{tpu_custom_call.1} parent=1 // pred_check
      %p17 = pneg %p16
    $region15: #{tpu_custom_call.1} parent=1 // pred_check_branch
      %19 = sbr.rel (%p17) target = $region17
    $region16: #{tpu_custom_call.1} parent=1 // pred_region
      %vm20 = vcmask 261120
      %21 = vst.msk [vmem:[#allocation2] sm:$0xff] %vm20, 0.0
    $region17: #{tpu_custom_call.1} parent=1 // pred_fallthru
      _
    %v22 = vld [vmem:[#allocation2] sm:$0xff]
    %v23 = vld [vmem:[%s0] sm:$0xff]
    %v24 = vld [vmem:[%s0 + $0x8] sm:$0xff]
    %v25 = vpack.c.bf16 %v23, %v23
    %v26 = vpack.c.bf16 %v24, %v24
    %v27 = vld [vmem:[%s1] sm:$0xf]
    %v28 = vld [vmem:[%s1 + $0x4] sm:$0xf]
    %v29 = vld [vmem:[%s1 + $0x8] sm:$0xf]
    %v30 = vld [vmem:[%s1 + $0xc] sm:$0xf]
    %v31 = vld [vmem:[%s1 + $0x10] sm:$0xf]
    %v32 = vld [vmem:[%s1 + $0x14] sm:$0xf]
    %v33 = vld [vmem:[%s1 + $0x18] sm:$0xf]
    %v34 = vld [vmem:[%s1 + $0x1c] sm:$0xf]
    %v35 = vld [vmem:[%s1 + $0x20] sm:$0xf]
    %v36 = vld [vmem:[%s1 + $0x24] sm:$0xf]
    %v37 = vld [vmem:[%s1 + $0x28] sm:$0xf]
    %v38 = vld [vmem:[%s1 + $0x2c] sm:$0xf]
    %v39 = vld [vmem:[%s1 + $0x30] sm:$0xf]
    %v40 = vld [vmem:[%s1 + $0x34] sm:$0xf]
    %v41 = vld [vmem:[%s1 + $0x38] sm:$0xf]
    %v42 = vld [vmem:[%s1 + $0x3c] sm:$0xf]
    %v43 = vld [vmem:[%s1 + $0x40] sm:$0xf]
    %v44 = vld [vmem:[%s1 + $0x44] sm:$0xf]
    %v45 = vld [vmem:[%s1 + $0x48] sm:$0xf]
    %v46 = vld [vmem:[%s1 + $0x4c] sm:$0xf]
    %v47 = vld [vmem:[%s1 + $0x50] sm:$0xf]
    %v48 = vld [vmem:[%s1 + $0x54] sm:$0xf]
    %v49 = vld [vmem:[%s1 + $0x58] sm:$0xf]
    %v50 = vld [vmem:[%s1 + $0x5c] sm:$0xf]
    %v75 = vunpack.c.l.b16 %v27
    %v76 = vunpack.c.l.b16 %v28
    %v77 = vunpack.c.l.b16 %v29
    %v78 = vunpack.c.l.b16 %v30
    %v79 = vunpack.c.l.b16 %v31
    %v80 = vunpack.c.l.b16 %v32
    %v81 = vunpack.c.l.b16 %v33
    %v82 = vunpack.c.l.b16 %v34
    %v83 = vunpack.c.l.b16 %v35
    %v84 = vunpack.c.l.b16 %v36
    %v85 = vunpack.c.l.b16 %v37
    %v86 = vunpack.c.l.b16 %v38
    %v87 = vunpack.c.l.b16 %v39
    %v88 = vunpack.c.l.b16 %v40
    %v89 = vunpack.c.l.b16 %v41
    %v90 = vunpack.c.l.b16 %v42
    %v91 = vunpack.c.l.b16 %v43
    %v92 = vunpack.c.l.b16 %v44
    %v93 = vunpack.c.l.b16 %v45
    %v94 = vunpack.c.l.b16 %v46
    %v95 = vunpack.c.l.b16 %v47
    %v96 = vunpack.c.l.b16 %v48
    %v97 = vunpack.c.l.b16 %v49
    %v98 = vunpack.c.l.b16 %v50
    %v99 = vpack.c.b16 %v76, %v75
    %v100 = vpack.c.b16 %v78, %v77
    %v101 = vpack.c.b16 %v80, %v79
    %v102 = vpack.c.b16 %v82, %v81
    %v103 = vpack.c.b16 %v84, %v83
    %v104 = vpack.c.b16 %v86, %v85
    %v105 = vpack.c.b16 %v88, %v87
    %v106 = vpack.c.b16 %v90, %v89
    %v107 = vpack.c.b16 %v92, %v91
    %v108 = vpack.c.b16 %v94, %v93
    %v109 = vpack.c.b16 %v96, %v95
    %v110 = vpack.c.b16 %v98, %v97
    %vm123 = vcmask 523264
    %v125 = vsel %vm123, %v26, 0
    %127 = vmatprep.subr.bf16.mxu0 0
    %128 = vmatpush1.bf16.msra.mxu0 %v106
    %129 = vmatprep.subr.bf16.mxu0 0
    %130 = vmatpush1.bf16.msra.mxu0 %v105
    %131 = vmatprep.subr.bf16.mxu0 0
    %132 = vmatpush1.bf16.msra.mxu0 %v104
    %133 = vmatprep.subr.bf16.mxu0 0
    %134 = vmatpush1.bf16.msra.mxu0 %v103
    %135 = vmatprep.subr.bf16.mxu0 0
    %136 = vmatpush1.bf16.msra.mxu0 %v102
    %137 = vmatprep.subr.bf16.mxu0 0
    %138 = vmatpush1.bf16.msra.mxu0 %v101
    %139 = vmatprep.subr.bf16.mxu0 0
    %140 = vmatpush1.bf16.msra.mxu0 %v100
    %141 = vmatprep.subr.bf16.mxu0 0
    %142 = vmatpush1.bf16.msra.mxu0 %v99
    %143 = vmatprep.subr.bf16.mxu0 0
    %144 = vmatpush2.bf16.msra.mxu0 0
    %145 = vmatprep.subr.bf16.mxu0 0
    %146 = vmatpush2.bf16.msra.mxu0 0
    %147 = vmatprep.subr.bf16.mxu0 0
    %148 = vmatpush2.bf16.msra.mxu0 0
    %149 = vmatprep.subr.bf16.mxu0 0
    %150 = vmatpush2.bf16.msra.mxu0 0
    %151 = vmatprep.subr.bf16.mxu0 0
    %152 = vmatpush2.bf16.msra.mxu0 %v110
    %153 = vmatprep.subr.bf16.mxu0 0
    %154 = vmatpush2.bf16.msra.mxu0 %v109
    %155 = vmatprep.subr.bf16.mxu0 0
    %156 = vmatpush2.bf16.msra.mxu0 %v108
    %157 = vmatprep.subr.bf16.mxu0 0
    %158 = vmatpush2.bf16.msra.mxu0 %v107
    %159 = vmatprep.mubr.bf16.mxu0 %v125
    %160 = vmatmul.mubr.bf16.gmra.mxu0 %v25
    %v161 = vpop.f32.mrf.mxu0
    %v162 = vadd.f32 0.0, %v161
    %v163 = vpop.f32.mrf.mxu0
    %v164 = vpop.f32.mrf.mxu0
    %v165 = vpop.f32.mrf.mxu0
    %166 = vdwg.mxu0
    %v167 = vadd.f32 %v22, %v162
    %vm168 = vcmask 261120
    %169 = vst.msk [vmem:[#allocation2] sm:$0xff] %vm168, %v167
    // Predicated region
    $region18: #{tpu_custom_call.1} parent=1 // pred_check
      %p170 = pneg %p16
    $region19: #{tpu_custom_call.1} parent=1 // pred_check_branch
      %172 = sbr.rel (%p170) target = $region21
    $region20: #{tpu_custom_call.1} parent=1 // pred_region
      %v173 = vld [vmem:[#allocation2] sm:$0xff]
      %v174 = vld [vmem:[%s2] sm:$0x1]
      %v176 = vlaneseq
      %v177 = vshrl.u32 %v176, 7
      %v178 = vsub.s32 0, %v177
      %v179 = vrot.slane %v174, %v178
      %v181 = vadd.f32 %v173, %v179
      %182 = vst.msk [vmem:[#allocation3] sm:$0xff] %vm168, %v181
    $region21: #{tpu_custom_call.1} parent=1 // pred_fallthru
      _
    // Predicated region
    $region22: #{tpu_custom_call.1} parent=1 // pred_check
      _
    $region23: #{tpu_custom_call.1} parent=1 // pred_check_branch
      %184 = sbr.rel (0) target = $region25
    $region24: #{tpu_custom_call.1} parent=1 // pred_region
      %s186 = ssub.s32 128, 128
      %187 = vsyncadd [#allocation4], %s186
      %s189 = sshll.u32 [#allocation3], 4
      %s190 = int_to_ptr.vmem [resolvable:$true] %s189
      %192 = dma.vmem_to_hbm [thread:$0]  %s190, 128, %s3, [#allocation4]
    $region25: #{tpu_custom_call.1} parent=1 // pred_fallthru
      _
    // Predicated region
    $region26: #{tpu_custom_call.1} parent=1 // pred_check
      _
    $region27: #{tpu_custom_call.1} parent=1 // pred_check_branch
      %194 = sbr.rel (0) target = $region29
    $region28: #{tpu_custom_call.1} parent=1 // pred_region
      %195 = dma.done [#allocation4], 128
    $region29: #{tpu_custom_call.1} parent=1 // pred_fallthru
      _
    %196 = vsyncpa [#allocation4], 1

</llo_original>
